<compile_context>
chip_gen: v7x
topology: tpu7x:2x2x1
jax: 0.10.0
libtpu: 0.0.40
codegen_flags: <defaults>
</compile_context>

<pallas_src>
import functools
import math

import jax
import jax.numpy as jnp
from jax import lax
from jax.experimental import pallas as pl
from jax.experimental.pallas import tpu as pltpu


def _level_params(H, W, out_side):
    """Per-level (kh, kw, sh, sw, oh, ow) matching torch MaxPool2d semantics."""
    params = []
    for n in out_side:
        kh, kw = math.ceil(H / n), math.ceil(W / n)
        sh, sw = math.floor(H / n), math.floor(W / n)
        if sh == 0 or sw == 0:
            raise ValueError(
                f"pyramid level {n} exceeds spatial dims ({H}, {W}); stride would be 0")
        oh = (H - kh) // sh + 1
        ow = (W - kw) // sw + 1
        params.append((kh, kw, sh, sw, oh, ow))
    return params


def _choose_c_blk(C, H, W, itemsize, budget=4 * 1024 * 1024):
    """Largest channel block that (a) double-buffers within `budget` bytes and
    (b) satisfies the TPU blocking rule (block last dim == full dim or % 128 == 0)."""
    if 2 * C * H * W * itemsize <= budget or C % 128 != 0:
        return C
    max_blk = max(128, (budget // (2 * H * W * itemsize)) // 128 * 128)
    c_blk = min(C, max_blk)
    while c_blk > 128 and C % c_blk != 0:
        c_blk -= 128
    return c_blk if C % c_blk == 0 else C


def _spp_kernel(x_ref, out_ref, *, level_params, level_offsets):
    """x_ref: (H, W, C_BLK) slab with channels on lanes.
    out_ref: (total_bins, C_BLK); bin order = (level, i, j) row-major per level."""
    H, W, CB = x_ref.shape
    x = x_ref[...]
    if x.dtype != jnp.float32:
        x = x.astype(jnp.float32)  # keep the maximum tree on the f32 VPU path

    for (kh, kw, sh, sw, oh, ow), off in zip(level_params, level_offsets):
        exact = (kh == sh and kw == sw and oh * kh == H and ow * kw == W)
        if exact:
            # Non-overlapping windows: two reshape + single-axis max reductions.
            r1 = jnp.max(x.reshape(oh, kh, W, CB), axis=1)    # (oh, W, CB)   VPU
            r2 = jnp.max(r1.reshape(oh, ow, kw, CB), axis=2)  # (oh, ow, CB)  small XLU
            out_ref[pl.ds(off, oh * ow), :] = (
                r2.reshape(oh * ow, CB).astype(out_ref.dtype))
        else:
            # General overlapping (ceil/floor) case: statically unrolled but still
            # vectorized across the channel (lane) axis.
            for i in range(oh):
                rmax = jnp.max(x[i * sh:i * sh + kh], axis=0)            # (W, CB)
                for j in range(ow):
                    cmax = jnp.max(rmax[j * sw:j * sw + kw], axis=0,
                                   keepdims=True)                        # (1, CB)
                    out_ref[pl.ds(off + i * ow + j, 1), :] = cmax.astype(out_ref.dtype)


def spatial_pyramid_pool2d(x, out_side):
    """Pallas TPU implementation of SpatialPyramidPool2D.forward.

    x: (N, C, H, W) exactly like the torch module.
    Returns (N, sum_over_levels(C * oh_l * ow_l)) with torch's flatten/cat ordering.
    """
    N, C, H, W = x.shape
    params = _level_params(H, W, out_side)
    sizes = [oh * ow for (_, _, _, _, oh, ow) in params]
    offsets = [sum(sizes[:i]) for i in range(len(sizes))]
    total_bins = sum(sizes)

    itemsize = jnp.dtype(x.dtype).itemsize
    c_blk = _choose_c_blk(C, H, W, itemsize)
    num_cb = C // c_blk

    # NCHW -> NHWC so the channel block lands on the 128-lane axis in the kernel.
    x_nhwc = jnp.transpose(x, (0, 2, 3, 1))

    kernel = functools.partial(
        _spp_kernel, level_params=tuple(params), level_offsets=tuple(offsets))

    in_block_bytes = c_blk * H * W * itemsize
    out_block_bytes = total_bins * c_blk * itemsize
    vmem_limit = int(min(100 * 1024 * 1024,
                         max(32 * 1024 * 1024,
                             3 * (in_block_bytes + out_block_bytes))))

    pooled = pl.pallas_call(
        kernel,
        out_shape=jax.ShapeDtypeStruct((N, num_cb, total_bins, c_blk), x.dtype),
        grid=(N, num_cb),
        in_specs=[pl.BlockSpec((None, H, W, c_blk), lambda b, cb: (b, 0, 0, cb))],
        out_specs=pl.BlockSpec((None, None, total_bins, c_blk),
                               lambda b, cb: (b, cb, 0, 0)),
        compiler_params=pltpu.CompilerParams(
            dimension_semantics=("parallel", "parallel"),
            vmem_limit_bytes=vmem_limit),
    )(x_nhwc)

    # Pure-JAX glue: per level, reorder to torch's y.view(N, -1) ordering
    # (index = c*oh*ow + i*ow + j) and concatenate levels along dim 1.
    chunks = []
    for (kh, kw, sh, sw, oh, ow), off in zip(params, offsets):
        lvl = pooled[:, :, off:off + oh * ow, :]       # (N, num_cb, oh*ow, c_blk)
        lvl = jnp.transpose(lvl, (0, 1, 3, 2))         # (N, num_cb, c_blk, oh*ow)
        chunks.append(lvl.reshape(N, C * oh * ow))
    return jnp.concatenate(chunks, axis=1)


def _reference(x, out_side):
    """Pure-JAX reference (lax.reduce_window == torch MaxPool2d, VALID padding)."""
    N, C, H, W = x.shape
    outs = []
    for (kh, kw, sh, sw, oh, ow) in _level_params(H, W, out_side):
        y = lax.reduce_window(
            x, -jnp.inf, lax.max,
            window_dimensions=(1, 1, kh, kw),
            window_strides=(1, 1, sh, sw),
            padding="VALID")
        outs.append(y.reshape(N, -1))
    return jnp.concatenate(outs, axis=1)


if __name__ == "__main__":
    key = jax.random.PRNGKey(0)
    x = jax.random.normal(key, (2, 4, 16, 16), dtype=jnp.float32)
    out_side = (1, 2, 4)  # pyramid levels -> 1x1, 2x2, 4x4 pooled maps

    y = jax.block_until_ready(spatial_pyramid_pool2d(x, out_side))

    ref = _reference(x, out_side)
    assert y.shape == (2, 4 * (1 * 1 + 2 * 2 + 4 * 4)), y.shape
    assert jnp.allclose(y, ref), "Pallas SPP output mismatch vs reference"
    print("KERNEL_OK")
</pallas_src>

<mosaic_0001>
module attributes {stable_mosaic.version = 11 : i64} {
  func.func @_spp_kernel(%arg0: i32, %arg1: i32, %arg2: memref<1x16x16x4xf32, #tpu.memory_space<vmem>>, %arg3: memref<1x1x21x4xf32, #tpu.memory_space<vmem>>) attributes {dimension_semantics = [#tpu.dimension_semantics<parallel>, #tpu.dimension_semantics<parallel>], iteration_bounds = array<i64: 2, 1>, scalar_prefetch = 0 : i64, scratch_operands = 0 : i64, tpu.core_type = #tpu.core_type<tc>, window_params = [{transform_indices = @transform_0, window_bounds = array<i64: 1, 16, 16, 4>}, {transform_indices = @transform_1, window_bounds = array<i64: 1, 1, 21, 4>}]} {
    %c0 = arith.constant 0 : index
    %c0_0 = arith.constant 0 : index
    %c0_1 = arith.constant 0 : index
    %c0_2 = arith.constant 0 : index
    %0 = vector.load %arg2[%c0, %c0_0, %c0_1, %c0_2] : memref<1x16x16x4xf32, #tpu.memory_space<vmem>>, vector<1x16x16x4xf32>
    %1 = vector.shape_cast %0 : vector<1x16x16x4xf32> to vector<16x16x4xf32>
    %2 = vector.shape_cast %1 : vector<16x16x4xf32> to vector<1x16x16x4xf32>
    %cst = arith.constant dense<0xFF800000> : vector<1x16x4xf32>
    %3 = vector.multi_reduction <maximumf>, %2, %cst [1] : vector<1x16x16x4xf32> to vector<1x16x4xf32>
    %4 = vector.shape_cast %3 : vector<1x16x4xf32> to vector<1x1x16x4xf32>
    %cst_3 = arith.constant dense<0xFF800000> : vector<1x1x4xf32>
    %5 = vector.multi_reduction <maximumf>, %4, %cst_3 [2] : vector<1x1x16x4xf32> to vector<1x1x4xf32>
    %6 = vector.shape_cast %5 : vector<1x1x4xf32> to vector<1x4xf32>
    %c0_4 = arith.constant 0 : index
    %c0_5 = arith.constant 0 : index
    %c0_6 = arith.constant 0 : index
    %c0_7 = arith.constant 0 : index
    %7 = vector.load %arg3[%c0_4, %c0_5, %c0_6, %c0_7] : memref<1x1x21x4xf32, #tpu.memory_space<vmem>>, vector<1x1x1x4xf32>
    %8 = vector.shape_cast %7 : vector<1x1x1x4xf32> to vector<1x4xf32>
    %9 = vector.shape_cast %6 : vector<1x4xf32> to vector<1x1x1x4xf32>
    tpu.vector_store %arg3[%c0_4, %c0_5, %c0_6, %c0_7], %9 {strides = array<i32>} : memref<1x1x21x4xf32, #tpu.memory_space<vmem>>, vector<1x1x1x4xf32>,
    %10 = vector.shape_cast %1 : vector<16x16x4xf32> to vector<2x8x16x4xf32>
    %cst_8 = arith.constant dense<0xFF800000> : vector<2x16x4xf32>
    %11 = vector.multi_reduction <maximumf>, %10, %cst_8 [1] : vector<2x8x16x4xf32> to vector<2x16x4xf32>
    %12 = vector.shape_cast %11 : vector<2x16x4xf32> to vector<2x2x8x4xf32>
    %cst_9 = arith.constant dense<0xFF800000> : vector<2x2x4xf32>
    %13 = vector.multi_reduction <maximumf>, %12, %cst_9 [2] : vector<2x2x8x4xf32> to vector<2x2x4xf32>
    %14 = vector.shape_cast %13 : vector<2x2x4xf32> to vector<4x4xf32>
    %c0_10 = arith.constant 0 : index
    %c0_11 = arith.constant 0 : index
    %c1 = arith.constant 1 : index
    %c0_12 = arith.constant 0 : index
    %15 = vector.load %arg3[%c0_10, %c0_11, %c1, %c0_12] : memref<1x1x21x4xf32, #tpu.memory_space<vmem>>, vector<1x1x4x4xf32>
    %16 = vector.shape_cast %15 : vector<1x1x4x4xf32> to vector<4x4xf32>
    %17 = vector.shape_cast %14 : vector<4x4xf32> to vector<1x1x4x4xf32>
    tpu.vector_store %arg3[%c0_10, %c0_11, %c1, %c0_12], %17 {strides = array<i32>} : memref<1x1x21x4xf32, #tpu.memory_space<vmem>>, vector<1x1x4x4xf32>,
    %18 = vector.shape_cast %1 : vector<16x16x4xf32> to vector<4x4x16x4xf32>
    %cst_13 = arith.constant dense<0xFF800000> : vector<4x16x4xf32>
    %19 = vector.multi_reduction <maximumf>, %18, %cst_13 [1] : vector<4x4x16x4xf32> to vector<4x16x4xf32>
    %20 = vector.shape_cast %19 : vector<4x16x4xf32> to vector<4x4x4x4xf32>
    %cst_14 = arith.constant dense<0xFF800000> : vector<4x4x4xf32>
    %21 = vector.multi_reduction <maximumf>, %20, %cst_14 [2] : vector<4x4x4x4xf32> to vector<4x4x4xf32>
    %22 = vector.shape_cast %21 : vector<4x4x4xf32> to vector<16x4xf32>
    %c0_15 = arith.constant 0 : index
    %c0_16 = arith.constant 0 : index
    %c5 = arith.constant 5 : index
    %c0_17 = arith.constant 0 : index
    %23 = vector.load %arg3[%c0_15, %c0_16, %c5, %c0_17] : memref<1x1x21x4xf32, #tpu.memory_space<vmem>>, vector<1x1x16x4xf32>
    %24 = vector.shape_cast %23 : vector<1x1x16x4xf32> to vector<16x4xf32>
    %25 = vector.shape_cast %22 : vector<16x4xf32> to vector<1x1x16x4xf32>
    tpu.vector_store %arg3[%c0_15, %c0_16, %c5, %c0_17], %25 {strides = array<i32>} : memref<1x1x21x4xf32, #tpu.memory_space<vmem>>, vector<1x1x16x4xf32>,
    return
  }
  func.func @transform_0(%arg0: i32, %arg1: i32) -> (i32, i32, i32, i32) {
    %c0_i32 = arith.constant 0 : i32
    %c0_i32_0 = arith.constant 0 : i32
    %c0_i32_1 = arith.constant 0 : i32
    return %arg0, %c0_i32, %c0_i32_0, %arg1 : i32, i32, i32, i32
  }
  func.func @transform_1(%arg0: i32, %arg1: i32) -> (i32, i32, i32, i32) {
    %c0_i32 = arith.constant 0 : i32
    %c0_i32_0 = arith.constant 0 : i32
    %c0_i32_1 = arith.constant 0 : i32
    return %arg0, %arg1, %c0_i32, %c0_i32_0 : i32, i32, i32, i32
  }
}

</mosaic_0001>

<llo_original>
// kernel: tpu_custom_call.1
$region0: #{tpu_custom_call.1}
  #allocation0 [shape = 'u32[]', space=smem, size = 0x4, offset = 0x4, fixed_abs, tag = 'smem constant byte address 0x4 - core index']
  #allocation1 [shape = 'u32[144,128]{1,0:T(1,128)}', space=vmem, size = 0x12000, scoped, tag = 'internal scratch']
  %s0 = inlined_call_operand.vmem [shape: f32[2,16,16,4], index: 0, kind: input, shape index: {}]
  %s1 = inlined_call_operand.vmem [shape: f32[2,1,21,4], index: 1, kind: output, shape index: {}]
  %s2 = sld [smem:[#allocation0]]
  $region37: #{tpu_custom_call.1} parent=0
    _
  %s4 = ssub.s32 1, %s2
  %s5 = scalar_select 0, %s4, %s2
  loop: start=0, step=1, limit=4
  $region2: #{tpu_custom_call.1} parent=0 // loop_pre_header
    _
  $region3: #{tpu_custom_call.1} parent=0 // loop_header
    %s7 = sphi 0, %s11
    %p8 = scmp.ge.s32.totalorder %s7, 4
    %s14 = sphi 0, %s26
    %s15 = sphi 0, %s22
    %s16 = sphi 0, %s14
    %s17 = sphi 0, %s15
    %s18 = sphi 0, %s16
    %s19 = sphi 0, %s17
    %s31 = sphi 0, %s33
    %s34 = sphi 0, %s31
    %s35 = sphi 0, %s34
    %s51 = sphi 0, %s35
    %s59 = sphi 0, %s61
    %s62 = sphi 0, %s59
    %s63 = sphi 0, %s62
    %s79 = sphi 0, %s63
  $region4: #{tpu_custom_call.1} parent=0 // loop_header_branch
    %10 = sbr.rel (%p8) target = $region8
  $region5: #{tpu_custom_call.1} parent=0 // loop_body
    %s12 = ssub.s32 %s7, 1
    %s13 = ssub.s32 %s7, 2
    %s20 = sadd.s32 1, %s15
    %p21 = scmp.ge.s32.totalorder %s20, 1
    %s22 = scalar_select %p21, 0, %s20
    %s23 = sadd.s32 1, %s14
    %s24 = scalar_select %p21, %s23, %s14
    %p25 = scmp.ge.s32.totalorder %s24, 2
    %s26 = scalar_select %p25, 0, %s24
    %s27 = ssub.s32 %s14, %s26
    %s28 = ssub.s32 %s15, %s22
    %s29 = sor.u32 %s27, %s28
    %p30 = scmp.eq.s32.totalorder %s29, 0
    %s32 = sadd.s32 %s31, 1
    %s33 = scalar_select %p30, %s31, %s32
    %p36 = pneg %p30
    %p37 = scmp.eq.s32.totalorder %s7, 1
    %p38 = por %p36, %p37
    %p39 = scmp.ne.s32.totalorder %s31, %s34
    %p40 = scmp.eq.s32.totalorder %s7, 0
    %p41 = por %p39, %p40
    %p42 = scmp.ne.s32.totalorder %s31, %s34
    %p43 = scmp.eq.s32.totalorder %s12, 1
    %p44 = por %p42, %p43
    %p45 = scmp.ne.s32.totalorder %s34, %s35
    %p46 = scmp.eq.s32.totalorder %s12, 0
    %p47 = por %p45, %p46
    %p48 = scmp.ne.s32.totalorder %s34, %s35
    %p49 = scmp.eq.s32.totalorder %s13, 1
    %p50 = por %p48, %p49
    %p52 = scmp.ne.s32.totalorder %s35, %s51
    %p53 = scmp.eq.s32.totalorder %s13, 0
    %p54 = por %p52, %p53
    %s55 = ssub.s32 %s14, %s26
    %s56 = ssub.s32 %s15, %s22
    %s57 = sor.u32 %s55, %s56
    %p58 = scmp.eq.s32.totalorder %s57, 0
    %s60 = sadd.s32 %s59, 1
    %s61 = scalar_select %p58, %s59, %s60
    %p64 = pneg %p58
    %p65 = scmp.eq.s32.totalorder %s7, 1
    %p66 = por %p64, %p65
    %p67 = scmp.ne.s32.totalorder %s59, %s62
    %p68 = scmp.eq.s32.totalorder %s7, 0
    %p69 = por %p67, %p68
    %p70 = scmp.ne.s32.totalorder %s59, %s62
    %p71 = scmp.eq.s32.totalorder %s12, 1
    %p72 = por %p70, %p71
    %p73 = scmp.ne.s32.totalorder %s62, %s63
    %p74 = scmp.eq.s32.totalorder %s12, 0
    %p75 = por %p73, %p74
    %p76 = scmp.ne.s32.totalorder %s62, %s63
    %p77 = scmp.eq.s32.totalorder %s13, 1
    %p78 = por %p76, %p77
    %p80 = scmp.ne.s32.totalorder %s63, %s79
    %p81 = scmp.eq.s32.totalorder %s13, 0
    %p82 = por %p80, %p81
    %p83 = scmp.le.s32.totalorder 1, %s7
    %p84 = scmp.lt.s32.totalorder %s7, 3
    %p85 = pnand %p83, %p84
    %p86 = pneg %p85
    // Predicated region
    $region9: #{tpu_custom_call.1} parent=5 // pred_check
      _
    $region10: #{tpu_custom_call.1} parent=5 // pred_check_branch
      %88 = sbr.rel (%p85) target = $region12
    $region11: #{tpu_custom_call.1} parent=5 // pred_region
      %s89 = ssub.s32 %s7, 1
    $region12: #{tpu_custom_call.1} parent=5 // pred_fallthru
      _
    %p90 = scmp.lt.s32.totalorder %s7, 2
    // Predicated region
    $region13: #{tpu_custom_call.1} parent=5 // pred_check
      %p91 = pneg %p90
    $region14: #{tpu_custom_call.1} parent=5 // pred_check_branch
      %93 = sbr.rel (%p91) target = $region16
    $region15: #{tpu_custom_call.1} parent=5 // pred_region
      // Predicated region
      $region17: #{tpu_custom_call.1} parent=15 // pred_check
        %p94 = pneg %p41
      $region18: #{tpu_custom_call.1} parent=15 // pred_check_branch
        %96 = sbr.rel (%p94) target = $region20
      $region19: #{tpu_custom_call.1} parent=15 // pred_region
        %p97 = scmp.lt.s32.totalorder %s14, 1
        %s98 = scalar_select %p97, %s14, 1
        %p99 = scmp.lt.s32.totalorder %s15, 0
        %s100 = scalar_select %p99, %s15, 0
        %s101 = smul.addr %s98, 32
        %s102 = sadd.s32 %s100, %s101
        %s103 = smul.addr %s102, 8
        %s104 = scalar_lea.vmem %s0, %s103
      $region20: #{tpu_custom_call.1} parent=15 // pred_fallthru
        _
    $region16: #{tpu_custom_call.1} parent=5 // pred_fallthru
      _
    %p105 = scmp.le.s32.totalorder 1, %s7
    %p106 = scmp.lt.s32.totalorder %s7, 3
    %p107 = pnand %p105, %p106
    %p108 = pneg %p107
    // Predicated region
    $region21: #{tpu_custom_call.1} parent=5 // pred_check
      _
    $region22: #{tpu_custom_call.1} parent=5 // pred_check_branch
      %110 = sbr.rel (%p107) target = $region24
    $region23: #{tpu_custom_call.1} parent=5 // pred_region
      %s111 = ssub.s32 %s7, 1
      %p112 = scmp.lt.s32.totalorder %s16, 1
      %s113 = scalar_select %p112, %s16, 1
      %p114 = scmp.lt.s32.totalorder %s17, 0
      %s115 = scalar_select %p114, %s17, 0
      %s116 = smul.addr %s113, 32
      %s117 = sadd.s32 %s115, %s116
      %s118 = smul.addr %s117, 8
      %s119 = scalar_lea.vmem %s0, %s118
      %p120 = pneg %p47
      %p121 = pneg %p44
      %p122 = pneg %p75
      %p123 = pneg %p72
      %p124 = scmp.lt.s32.totalorder %s16, 1
      %s125 = scalar_select %p124, %s16, 1
      %p126 = scmp.lt.s32.totalorder %s17, 0
      %s127 = scalar_select %p126, %s17, 0
      %s128 = smul.addr %s127, 3
      %s129 = smul.addr %s125, 3
      %s130 = sadd.s32 %s128, %s129
      %s131 = smul.addr %s130, 8
      %s132 = scalar_lea.vmem %s1, %s131
      %p133 = scmp.lt.s32.totalorder %s16, 1
      %s134 = scalar_select %p133, %s16, 1
      %p135 = scmp.lt.s32.totalorder %s17, 0
      %s136 = scalar_select %p135, %s17, 0
      %s137 = smul.addr %s134, 32
      %s138 = sadd.s32 %s136, %s137
      %s139 = smul.addr %s138, 8
      %s140 = scalar_lea.vmem %s0, %s139
      %p141 = scmp.lt.s32.totalorder %s16, 1
      %s142 = scalar_select %p141, %s16, 1
      %p143 = scmp.lt.s32.totalorder %s17, 0
      %s144 = scalar_select %p143, %s17, 0
      %s145 = smul.addr %s144, 3
      %s146 = smul.addr %s142, 3
      %s147 = sadd.s32 %s145, %s146
      %s148 = smul.addr %s147, 8
      %s149 = scalar_lea.vmem %s1, %s148
      %v150 = vld [vmem:[%s140] sm:$0xff]
      %v151 = vld [vmem:[%s140 + $0x8] sm:$0xff]
      %v152 = vld [vmem:[%s140 + $0x10] sm:$0xff]
      %v153 = vld [vmem:[%s140 + $0x18] sm:$0xff]
      %v154 = vld [vmem:[%s140 + $0x20] sm:$0xff]
      %v155 = vld [vmem:[%s140 + $0x28] sm:$0xff]
      %v156 = vld [vmem:[%s140 + $0x30] sm:$0xff]
      %v157 = vld [vmem:[%s140 + $0x38] sm:$0xff]
      %v158 = vld [vmem:[%s140 + $0x40] sm:$0xff]
      %v159 = vld [vmem:[%s140 + $0x48] sm:$0xff]
      %v160 = vld [vmem:[%s140 + $0x50] sm:$0xff]
      %v161 = vld [vmem:[%s140 + $0x58] sm:$0xff]
      %v162 = vld [vmem:[%s140 + $0x60] sm:$0xff]
      %v163 = vld [vmem:[%s140 + $0x68] sm:$0xff]
      %v164 = vld [vmem:[%s140 + $0x70] sm:$0xff]
      %v165 = vld [vmem:[%s140 + $0x78] sm:$0xff]
      %v166 = vld [vmem:[%s140 + $0x80] sm:$0xff]
      %v167 = vld [vmem:[%s140 + $0x88] sm:$0xff]
      %v168 = vld [vmem:[%s140 + $0x90] sm:$0xff]
      %v169 = vld [vmem:[%s140 + $0x98] sm:$0xff]
      %v170 = vld [vmem:[%s140 + $0xa0] sm:$0xff]
      %v171 = vld [vmem:[%s140 + $0xa8] sm:$0xff]
      %v172 = vld [vmem:[%s140 + $0xb0] sm:$0xff]
      %v173 = vld [vmem:[%s140 + $0xb8] sm:$0xff]
      %v174 = vld [vmem:[%s140 + $0xc0] sm:$0xff]
      %v175 = vld [vmem:[%s140 + $0xc8] sm:$0xff]
      %v176 = vld [vmem:[%s140 + $0xd0] sm:$0xff]
      %v177 = vld [vmem:[%s140 + $0xd8] sm:$0xff]
      %v178 = vld [vmem:[%s140 + $0xe0] sm:$0xff]
      %v179 = vld [vmem:[%s140 + $0xe8] sm:$0xff]
      %v180 = vld [vmem:[%s140 + $0xf0] sm:$0xff]
      %v181 = vld [vmem:[%s140 + $0xf8] sm:$0xff]
      %vm182 = vcmask 31744
      %v183 = vsel %vm182, %v150, -inf
      %v184 = vsel %vm182, %v152, -inf
      %v185 = vsel %vm182, %v154, -inf
      %v186 = vmax.f32 %v183, %v185
      %v187 = vsel %vm182, %v156, -inf
      %v188 = vmax.f32 %v184, %v187
      %v189 = vsel %vm182, %v158, -inf
      %v190 = vmax.f32 %v186, %v189
      %v191 = vsel %vm182, %v160, -inf
      %v192 = vmax.f32 %v188, %v191
      %v193 = vsel %vm182, %v162, -inf
      %v194 = vmax.f32 %v190, %v193
      %v195 = vsel %vm182, %v164, -inf
      %v196 = vmax.f32 %v192, %v195
      %v197 = vsel %vm182, %v166, -inf
      %v198 = vmax.f32 %v194, %v197
      %v199 = vsel %vm182, %v168, -inf
      %v200 = vmax.f32 %v196, %v199
      %v201 = vsel %vm182, %v170, -inf
      %v202 = vmax.f32 %v198, %v201
      %v203 = vsel %vm182, %v172, -inf
      %v204 = vmax.f32 %v200, %v203
      %v205 = vsel %vm182, %v174, -inf
      %v206 = vmax.f32 %v202, %v205
      %v207 = vsel %vm182, %v176, -inf
      %v208 = vmax.f32 %v204, %v207
      %v209 = vsel %vm182, %v178, -inf
      %v210 = vmax.f32 %v206, %v209
      %v211 = vsel %vm182, %v180, -inf
      %v212 = vmax.f32 %v208, %v211
      %v213 = vmax.f32 %v210, %v212
      %v214 = vsel %vm182, %v151, -inf
      %v215 = vsel %vm182, %v153, -inf
      %v216 = vsel %vm182, %v155, -inf
      %v217 = vmax.f32 %v214, %v216
      %v218 = vsel %vm182, %v157, -inf
      %v219 = vmax.f32 %v215, %v218
      %v220 = vsel %vm182, %v159, -inf
      %v221 = vmax.f32 %v217, %v220
      %v222 = vsel %vm182, %v161, -inf
      %v223 = vmax.f32 %v219, %v222
      %v224 = vsel %vm182, %v163, -inf
      %v225 = vmax.f32 %v221, %v224
      %v226 = vsel %vm182, %v165, -inf
      %v227 = vmax.f32 %v223, %v226
      %v228 = vsel %vm182, %v167, -inf
      %v229 = vmax.f32 %v225, %v228
      %v230 = vsel %vm182, %v169, -inf
      %v231 = vmax.f32 %v227, %v230
      %v232 = vsel %vm182, %v171, -inf
      %v233 = vmax.f32 %v229, %v232
      %v234 = vsel %vm182, %v173, -inf
      %v235 = vmax.f32 %v231, %v234
      %v236 = vsel %vm182, %v175, -inf
      %v237 = vmax.f32 %v233, %v236
      %v238 = vsel %vm182, %v177, -inf
      %v239 = vmax.f32 %v235, %v238
      %v240 = vsel %vm182, %v179, -inf
      %v241 = vmax.f32 %v237, %v240
      %v242 = vsel %vm182, %v181, -inf
      %v243 = vmax.f32 %v239, %v242
      %v244 = vmax.f32 %v241, %v243
      %v245 = vsel %vm182, %v213, -inf
      %v246 = vsel %vm182, %v244, -inf
      %v247 = vmax.f32 %v245, %v246
      %v248 = vrot.slane %v247, 4
      %v249 = vmax.f32 %v247, %v248
      %v250 = vrot.slane %v249, 2
      %v251 = vmax.f32 %v249, %v250
      %v252 = vrot.slane %v251, 1
      %v253 = vmax.f32 %v251, %v252
      %vm254 = vcmask 24576
      %255 = vst.msk [vmem:[%s149] sm:$0x1] %vm254, %v253
      %v256 = vmax.f32 %v183, %v184
      %v257 = vmax.f32 %v256, %v185
      %v258 = vmax.f32 %v257, %v187
      %v259 = vmax.f32 %v258, %v189
      %v260 = vmax.f32 %v259, %v191
      %v261 = vmax.f32 %v260, %v193
      %v262 = vmax.f32 %v261, %v195
      %v263 = vmax.f32 %v214, %v215
      %v264 = vmax.f32 %v263, %v216
      %v265 = vmax.f32 %v264, %v218
      %v266 = vmax.f32 %v265, %v220
      %v267 = vmax.f32 %v266, %v222
      %v268 = vmax.f32 %v267, %v224
      %v269 = vmax.f32 %v268, %v226
      %v270 = vmax.f32 %v197, %v199
      %v271 = vmax.f32 %v270, %v201
      %v272 = vmax.f32 %v271, %v203
      %v273 = vmax.f32 %v272, %v205
      %v274 = vmax.f32 %v273, %v207
      %v275 = vmax.f32 %v274, %v209
      %v276 = vmax.f32 %v275, %v211
      %v277 = vmax.f32 %v228, %v230
      %v278 = vmax.f32 %v277, %v232
      %v279 = vmax.f32 %v278, %v234
      %v280 = vmax.f32 %v279, %v236
      %v281 = vmax.f32 %v280, %v238
      %v282 = vmax.f32 %v281, %v240
      %v283 = vmax.f32 %v282, %v242
      %v284 = vsel %vm182, %v262, -inf
      %v285 = vrot.slane %v284, 4
      %v286 = vmax.f32 %v284, %v285
      %v287 = vrot.slane %v286, 2
      %v288 = vmax.f32 %v286, %v287
      %v289 = vrot.slane %v288, 1
      %v290 = vmax.f32 %v288, %v289
      %v291 = vsel %vm182, %v269, -inf
      %v292 = vrot.slane %v291, 4
      %v293 = vmax.f32 %v291, %v292
      %v294 = vrot.slane %v293, 2
      %v295 = vmax.f32 %v293, %v294
      %v296 = vrot.slane %v295, 1
      %v297 = vmax.f32 %v295, %v296
      %v298 = vsel %vm182, %v276, -inf
      %v299 = vrot.slane %v298, 4
      %v300 = vmax.f32 %v298, %v299
      %v301 = vrot.slane %v300, 2
      %v302 = vmax.f32 %v300, %v301
      %v303 = vrot.slane %v302, 1
      %v304 = vmax.f32 %v302, %v303
      %v305 = vsel %vm182, %v283, -inf
      %v306 = vrot.slane %v305, 4
      %v307 = vmax.f32 %v305, %v306
      %v308 = vrot.slane %v307, 2
      %v309 = vmax.f32 %v307, %v308
      %v310 = vrot.slane %v309, 1
      %v311 = vmax.f32 %v309, %v310
      %vm316 = vcmask 1041409
      %v317 = vsel %vm316, %v297, %v290
      %vm318 = vcmask 1042434
      %v319 = vsel %vm318, %v304, %v317
      %vm320 = vcmask 1043459
      %v321 = vsel %vm320, %v311, %v319
      %vm323 = vcmask 27648
      %324 = vst.msk [vmem:[%s149 + $0x1] sm:$0xf] %vm323, %v321
      %v325 = vmax.f32 %v189, %v191
      %v326 = vmax.f32 %v325, %v193
      %v327 = vmax.f32 %v326, %v195
      %v328 = vmax.f32 %v220, %v222
      %v329 = vmax.f32 %v328, %v224
      %v330 = vmax.f32 %v329, %v226
      %v331 = vmax.f32 %v205, %v207
      %v332 = vmax.f32 %v331, %v209
      %v333 = vmax.f32 %v332, %v211
      %v334 = vmax.f32 %v236, %v238
      %v335 = vmax.f32 %v334, %v240
      %v336 = vmax.f32 %v335, %v242
      %v345 = vcombine.high %v258, %v258
      %v346 = vcombine.high %v265, %v265
      %v347 = vcombine.high %v327, %v327
      %v348 = vcombine.high %v330, %v330
      %v349 = vcombine.high %v272, %v272
      %v350 = vcombine.high %v279, %v279
      %v351 = vcombine.high %v333, %v333
      %v352 = vcombine.high %v336, %v336
      %v361 = vsel %vm323, %v258, -inf
      %v362 = vrot.slane %v361, 4
      %v363 = vmax.f32 %v361, %v362
      %v364 = vrot.slane %v363, 2
      %v365 = vmax.f32 %v363, %v364
      %v366 = vrot.slane %v365, 1
      %v367 = vmax.f32 %v365, %v366
      %v368 = vsel %vm323, %v345, -inf
      %v369 = vrot.slane %v368, 4
      %v370 = vmax.f32 %v368, %v369
      %v371 = vrot.slane %v370, 2
      %v372 = vmax.f32 %v370, %v371
      %v373 = vrot.slane %v372, 1
      %v374 = vmax.f32 %v372, %v373
      %v375 = vsel %vm323, %v265, -inf
      %v376 = vrot.slane %v375, 4
      %v377 = vmax.f32 %v375, %v376
      %v378 = vrot.slane %v377, 2
      %v379 = vmax.f32 %v377, %v378
      %v380 = vrot.slane %v379, 1
      %v381 = vmax.f32 %v379, %v380
      %v382 = vsel %vm323, %v346, -inf
      %v383 = vrot.slane %v382, 4
      %v384 = vmax.f32 %v382, %v383
      %v385 = vrot.slane %v384, 2
      %v386 = vmax.f32 %v384, %v385
      %v387 = vrot.slane %v386, 1
      %v388 = vmax.f32 %v386, %v387
      %v389 = vsel %vm323, %v327, -inf
      %v390 = vrot.slane %v389, 4
      %v391 = vmax.f32 %v389, %v390
      %v392 = vrot.slane %v391, 2
      %v393 = vmax.f32 %v391, %v392
      %v394 = vrot.slane %v393, 1
      %v395 = vmax.f32 %v393, %v394
      %v396 = vsel %vm323, %v347, -inf
      %v397 = vrot.slane %v396, 4
      %v398 = vmax.f32 %v396, %v397
      %v399 = vrot.slane %v398, 2
      %v400 = vmax.f32 %v398, %v399
      %v401 = vrot.slane %v400, 1
      %v402 = vmax.f32 %v400, %v401
      %v403 = vsel %vm323, %v330, -inf
      %v404 = vrot.slane %v403, 4
      %v405 = vmax.f32 %v403, %v404
      %v406 = vrot.slane %v405, 2
      %v407 = vmax.f32 %v405, %v406
      %v408 = vrot.slane %v407, 1
      %v409 = vmax.f32 %v407, %v408
      %v410 = vsel %vm323, %v348, -inf
      %v411 = vrot.slane %v410, 4
      %v412 = vmax.f32 %v410, %v411
      %v413 = vrot.slane %v412, 2
      %v414 = vmax.f32 %v412, %v413
      %v415 = vrot.slane %v414, 1
      %v416 = vmax.f32 %v414, %v415
      %v417 = vsel %vm323, %v272, -inf
      %v418 = vrot.slane %v417, 4
      %v419 = vmax.f32 %v417, %v418
      %v420 = vrot.slane %v419, 2
      %v421 = vmax.f32 %v419, %v420
      %v422 = vrot.slane %v421, 1
      %v423 = vmax.f32 %v421, %v422
      %v424 = vsel %vm323, %v349, -inf
      %v425 = vrot.slane %v424, 4
      %v426 = vmax.f32 %v424, %v425
      %v427 = vrot.slane %v426, 2
      %v428 = vmax.f32 %v426, %v427
      %v429 = vrot.slane %v428, 1
      %v430 = vmax.f32 %v428, %v429
      %v431 = vsel %vm323, %v279, -inf
      %v432 = vrot.slane %v431, 4
      %v433 = vmax.f32 %v431, %v432
      %v434 = vrot.slane %v433, 2
      %v435 = vmax.f32 %v433, %v434
      %v436 = vrot.slane %v435, 1
      %v437 = vmax.f32 %v435, %v436
      %v438 = vsel %vm323, %v350, -inf
      %v439 = vrot.slane %v438, 4
      %v440 = vmax.f32 %v438, %v439
      %v441 = vrot.slane %v440, 2
      %v442 = vmax.f32 %v440, %v441
      %v443 = vrot.slane %v442, 1
      %v444 = vmax.f32 %v442, %v443
      %v445 = vsel %vm323, %v333, -inf
      %v446 = vrot.slane %v445, 4
      %v447 = vmax.f32 %v445, %v446
      %v448 = vrot.slane %v447, 2
      %v449 = vmax.f32 %v447, %v448
      %v450 = vrot.slane %v449, 1
      %v451 = vmax.f32 %v449, %v450
      %v452 = vsel %vm323, %v351, -inf
      %v453 = vrot.slane %v452, 4
      %v454 = vmax.f32 %v452, %v453
      %v455 = vrot.slane %v454, 2
      %v456 = vmax.f32 %v454, %v455
      %v457 = vrot.slane %v456, 1
      %v458 = vmax.f32 %v456, %v457
      %v459 = vsel %vm323, %v336, -inf
      %v460 = vrot.slane %v459, 4
      %v461 = vmax.f32 %v459, %v460
      %v462 = vrot.slane %v461, 2
      %v463 = vmax.f32 %v461, %v462
      %v464 = vrot.slane %v463, 1
      %v465 = vmax.f32 %v463, %v464
      %v466 = vsel %vm323, %v352, -inf
      %v467 = vrot.slane %v466, 4
      %v468 = vmax.f32 %v466, %v467
      %v469 = vrot.slane %v468, 2
      %v470 = vmax.f32 %v468, %v469
      %v471 = vrot.slane %v470, 1
      %v472 = vmax.f32 %v470, %v471
      %v489 = vsel %vm316, %v374, %v367
      %v490 = vsel %vm318, %v381, %v489
      %v491 = vsel %vm320, %v388, %v490
      %vm492 = vcmask 1044484
      %v493 = vsel %vm492, %v395, %v491
      %vm494 = vcmask 1045509
      %v495 = vsel %vm494, %v402, %v493
      %vm496 = vcmask 1046534
      %v497 = vsel %vm496, %v409, %v495
      %vm498 = vcmask 1047559
      %v499 = vsel %vm498, %v416, %v497
      %v500 = vsel %vm316, %v430, %v423
      %v501 = vsel %vm318, %v437, %v500
      %v502 = vsel %vm320, %v444, %v501
      %v503 = vsel %vm492, %v451, %v502
      %v504 = vsel %vm494, %v458, %v503
      %v505 = vsel %vm496, %v465, %v504
      %v506 = vsel %vm498, %v472, %v505
      %509 = vst.msk [vmem:[%s149 + $0x5] sm:$0xff] %vm182, %v499
      %510 = vst.msk [vmem:[%s149 + $0xd] sm:$0xff] %vm182, %v506
      %p511 = scmp.lt.s32.totalorder %s16, 1
      %s512 = scalar_select %p511, %s16, 1
      %p513 = scmp.lt.s32.totalorder %s17, 0
      %s514 = scalar_select %p513, %s17, 0
      %s515 = smul.addr %s514, 3
      %s516 = smul.addr %s512, 3
      %s517 = sadd.s32 %s515, %s516
      %s518 = smul.addr %s517, 8
      %s519 = scalar_lea.vmem %s1, %s518
      // Predicated region
      $region25: #{tpu_custom_call.1} parent=23 // pred_check
        %p520 = pneg %p72
      $region26: #{tpu_custom_call.1} parent=23 // pred_check_branch
        %522 = sbr.rel (%p520) target = $region28
      $region27: #{tpu_custom_call.1} parent=23 // pred_region
        _
      $region28: #{tpu_custom_call.1} parent=23 // pred_fallthru
        _
    $region24: #{tpu_custom_call.1} parent=5 // pred_fallthru
      _
    %p523 = scmp.le.s32.totalorder 2, %s7
    // Predicated region
    $region29: #{tpu_custom_call.1} parent=5 // pred_check
      %p524 = pneg %p523
    $region30: #{tpu_custom_call.1} parent=5 // pred_check_branch
      %526 = sbr.rel (%p524) target = $region32
    $region31: #{tpu_custom_call.1} parent=5 // pred_region
      %s527 = ssub.s32 %s7, 2
      // Predicated region
      $region33: #{tpu_custom_call.1} parent=31 // pred_check
        %p528 = pneg %p78
      $region34: #{tpu_custom_call.1} parent=31 // pred_check_branch
        %530 = sbr.rel (%p528) target = $region36
      $region35: #{tpu_custom_call.1} parent=31 // pred_region
        %p531 = scmp.lt.s32.totalorder %s18, 1
        %s532 = scalar_select %p531, %s18, 1
        %p533 = scmp.lt.s32.totalorder %s19, 0
        %s534 = scalar_select %p533, %s19, 0
        %s535 = smul.addr %s534, 3
        %s536 = smul.addr %s532, 3
        %s537 = sadd.s32 %s535, %s536
        %s538 = smul.addr %s537, 8
        %s539 = scalar_lea.vmem %s1, %s538
      $region36: #{tpu_custom_call.1} parent=31 // pred_fallthru
        _
    $region32: #{tpu_custom_call.1} parent=5 // pred_fallthru
      _
  $region6: #{tpu_custom_call.1} parent=0 // loop_footer
    %s11 = sadd.s32 1, %s7
  $region7: #{tpu_custom_call.1} parent=0 // loop_footer_branch
    %6 = sbr.rel target = $region3
  $region8: #{tpu_custom_call.1} parent=0 // loop_exit
    _

</llo_original>
